<compile_context>
chip_gen: v7x
topology: tpu7x:2x2x1
jax: 0.10.0
libtpu: 0.0.40
codegen_flags: <defaults>
</compile_context>

<pallas_src>
import jax
import jax.numpy as jnp
import numpy as np
from jax.experimental import pallas as pl
from jax.experimental.pallas import tpu as pltpu

# Problem sizes implied by the PyTorch module (input np.random.rand(10, 2, 3, 3)).
N, CIN, H, W = 10, 2, 3, 3
COUT, KH, KW = 3, 2, 2
OH, OW = H - KH + 1, W - KW + 1           # valid conv, stride 1
K = CIN * KH * KW                         # contraction size = 8
M = N * OH * OW                           # flattened output positions = 40

COUT_PAD = 8                              # sublane-pad COUT (3 -> 8)
M_PAD = 128                               # lane-pad M (40 -> 128): unmasked loads/stores


def _build_im2col_indices():
    """Static (K, M_PAD) int32 flat-index matrix into x.reshape(-1).

    Row k = cin*(KH*KW) + kh*KW + kw  (matches w_oihw.reshape(COUT, K)).
    Col m = n*(OH*OW) + oh*OW + ow    (matches the output reshape below).
    Columns >= M are lane padding; they reuse index 0 — those output columns are
    sliced off after the kernel, so any value is fine (no pad HLO needed).
    """
    idx = np.zeros((K, M_PAD), dtype=np.int32)
    for cin in range(CIN):
        for kh in range(KH):
            for kw in range(KW):
                k = cin * (KH * KW) + kh * KW + kw
                for n in range(N):
                    for oh in range(OH):
                        for ow in range(OW):
                            m = n * (OH * OW) + oh * OW + ow
                            idx[k, m] = (n * CIN * H * W + cin * H * W
                                         + (kh + oh) * W + (kw + ow))
    return idx


_IM2COL_IDX = _build_im2col_indices()     # static numpy constant, folded by XLA


def conv_kernel(x_ref, w_ref, o_ref):
    """x_ref: (K=8, M_PAD=128) f32, w_ref: (COUT_PAD=8, K=8) f32, o_ref: (8, 128) f32.

    Single fused MXU contraction; the whole output is one lane-dense vreg slab,
    stored with a full-tile (unmasked) write.
    """
    o_ref[...] = jnp.dot(w_ref[...], x_ref[...], preferred_element_type=jnp.float32)


@jax.jit
def conv2d_pallas(x_nchw, w_oihw):
    """x_nchw: (N, CIN, H, W) f32, w_oihw: (COUT, CIN, KH, KW) f32 -> (N, COUT, OH, OW)."""
    # ---- glue: ONE gather HLO builds the padded lane-dense im2col directly ----
    x_mat = x_nchw.reshape(-1)[_IM2COL_IDX]                        # (8, 128) f32
    # Weights: (3, 8) -> zero-pad COUT rows to 8 (96 B, negligible).
    w_mat = jnp.pad(w_oihw.reshape(COUT, K), ((0, COUT_PAD - COUT), (0, 0)))  # (8, 8)

    # ---- hot path: one Pallas call, whole tiles resident in VMEM ----
    out_slab = pl.pallas_call(
        conv_kernel,
        out_shape=jax.ShapeDtypeStruct((COUT_PAD, M_PAD), jnp.float32),
        in_specs=[
            pl.BlockSpec(memory_space=pltpu.MemorySpace.VMEM),
            pl.BlockSpec(memory_space=pltpu.MemorySpace.VMEM),
        ],
        out_specs=pl.BlockSpec(memory_space=pltpu.MemorySpace.VMEM),
        cost_estimate=pl.CostEstimate(
            flops=2 * COUT_PAD * K * M_PAD,
            transcendentals=0,
            bytes_accessed=(K * M_PAD + COUT_PAD * K + COUT_PAD * M_PAD) * 4,
        ),
    )(x_mat, w_mat)

    # ---- glue: back to NCHW ----
    out_cm = out_slab[:COUT, :M]                                   # (COUT, M)
    out = out_cm.reshape(COUT, N, OH, OW)
    return jnp.transpose(out, (1, 0, 2, 3))                        # (N, COUT, OH, OW)


if __name__ == "__main__":
    key = jax.random.PRNGKey(0)
    kx, kw = jax.random.split(key)

    # Deterministic example inputs matching nn.Conv2d(2, 3, 2, bias=False) shapes.
    x = jax.random.uniform(kx, (N, CIN, H, W), dtype=jnp.float32)
    w = (jax.random.normal(kw, (COUT, CIN, KH, KW), dtype=jnp.float32)
         * (1.0 / np.sqrt(CIN * KH * KW)))

    out = conv2d_pallas(x, w)
    out = jax.block_until_ready(out)

    # Reference: XLA's conv with the same semantics as nn.Conv2d valid conv (no bias).
    ref = jax.lax.conv_general_dilated(
        x, w, window_strides=(1, 1), padding="VALID",
        dimension_numbers=("NCHW", "OIHW", "NCHW"))
    ref = jax.block_until_ready(ref)

    assert out.shape == (N, COUT, OH, OW), out.shape
    np.testing.assert_allclose(np.asarray(out), np.asarray(ref), rtol=1e-5, atol=1e-5)

    print("KERNEL_OK")
</pallas_src>

<mosaic_0001>
module attributes {stable_mosaic.version = 11 : i64} {
  func.func @conv_kernel(%arg0: memref<8x128xf32, #tpu.memory_space<vmem>>, %arg1: memref<8x8xf32, #tpu.memory_space<vmem>>, %arg2: memref<8x128xf32, #tpu.memory_space<vmem>>) attributes {dimension_semantics = [], scalar_prefetch = 0 : i64, scratch_operands = 0 : i64, tpu.core_type = #tpu.core_type<tc>} {
    %c0 = arith.constant 0 : index
    %c0_0 = arith.constant 0 : index
    %0 = vector.load %arg1[%c0, %c0_0] : memref<8x8xf32, #tpu.memory_space<vmem>>, vector<8x8xf32>
    %c0_1 = arith.constant 0 : index
    %c0_2 = arith.constant 0 : index
    %1 = vector.load %arg0[%c0_1, %c0_2] : memref<8x128xf32, #tpu.memory_space<vmem>>, vector<8x128xf32>
    %cst = arith.constant dense<0.000000e+00> : vector<8x128xf32>
    %2 = tpu.matmul %0, %1, %cst {dimension_numbers = #tpu.dot_dimension_numbers<[1], [0], [0], [1], [0, 0, 1, 1], [], []>} : vector<8x8xf32>, vector<8x128xf32>, vector<8x128xf32> -> vector<8x128xf32>
    %c0_3 = arith.constant 0 : index
    %c0_4 = arith.constant 0 : index
    %3 = vector.load %arg2[%c0_3, %c0_4] : memref<8x128xf32, #tpu.memory_space<vmem>>, vector<8x128xf32>
    tpu.vector_store %arg2[%c0_3, %c0_4], %2 {strides = array<i32>} : memref<8x128xf32, #tpu.memory_space<vmem>>, vector<8x128xf32>,
    return
  }
}

</mosaic_0001>

<llo_original>
// kernel: conv2d_pallas.1
$region0: #{conv2d_pallas.1}
  #allocation0 [shape = 'u32[]', space=smem, size = 0x4, offset = 0x4, fixed_abs, tag = 'smem constant byte address 0x4 - core index']
  #allocation1 [shape = 'u32[144,128]{1,0:T(1,128)}', space=vmem, size = 0x12000, scoped, tag = 'internal scratch']
  %s0 = inlined_call_operand.vmem [shape: f32[8,128], index: 0, kind: input, shape index: {}]
  %s1 = inlined_call_operand.vmem [shape: f32[8,8], index: 1, kind: input, shape index: {}]
  %s2 = inlined_call_operand.vmem [shape: f32[8,128], index: 2, kind: output, shape index: {}]
  %s3 = sld [smem:[#allocation0]]
  $region18: #{conv2d_pallas.1} parent=0
    _
  %s5 = ssub.s32 1, %s3
  %s6 = scalar_select 0, %s5, %s3
  // Predicated region
  $region2: #{conv2d_pallas.1} parent=0 // pred_check
    _
  $region3: #{conv2d_pallas.1} parent=0 // pred_check_branch
    %8 = sbr.rel (0) target = $region5
  $region4: #{conv2d_pallas.1} parent=0 // pred_region
    _
  $region5: #{conv2d_pallas.1} parent=0 // pred_fallthru
    _
  // Predicated region
  $region6: #{conv2d_pallas.1} parent=0 // pred_check
    _
  $region7: #{conv2d_pallas.1} parent=0 // pred_check_branch
    %10 = sbr.rel (0) target = $region9
  $region8: #{conv2d_pallas.1} parent=0 // pred_region
    _
  $region9: #{conv2d_pallas.1} parent=0 // pred_fallthru
    _
  %v11 = vld [vmem:[%s1] sm:$0xff]
  %v12 = vld [vmem:[%s0] sm:$0xff]
  %vm13 = vcmask 64512
  %v15 = vsel %vm13, %v11, 0
  %17 = vmatprep.subr.mxu0 0.0
  %18 = vmatpush1.msra.mxu0 %v12
  %19 = vmatprep.subr.mxu0 0.0
  %20 = vmatpush1.msra.mxu0 0.0
  %21 = vmatprep.subr.mxu0 0.0
  %22 = vmatpush1.msra.mxu0 0.0
  %23 = vmatprep.subr.mxu0 0.0
  %24 = vmatpush1.msra.mxu0 0.0
  %25 = vmatprep.subr.mxu0 0.0
  %26 = vmatpush1.msra.mxu0 0.0
  %27 = vmatprep.subr.mxu0 0.0
  %28 = vmatpush1.msra.mxu0 0.0
  %29 = vmatprep.subr.mxu0 0.0
  %30 = vmatpush1.msra.mxu0 0.0
  %31 = vmatprep.subr.mxu0 0.0
  %32 = vmatpush1.msra.mxu0 0.0
  %33 = vmatprep.subr.mxu0 0.0
  %34 = vmatpush1.msra.mxu0 0.0
  %35 = vmatprep.subr.mxu0 0.0
  %36 = vmatpush1.msra.mxu0 0.0
  %37 = vmatprep.subr.mxu0 0.0
  %38 = vmatpush1.msra.mxu0 0.0
  %39 = vmatprep.subr.mxu0 0.0
  %40 = vmatpush1.msra.mxu0 0.0
  %41 = vmatprep.subr.mxu0 0.0
  %42 = vmatpush1.msra.mxu0 0.0
  %43 = vmatprep.subr.mxu0 0.0
  %44 = vmatpush1.msra.mxu0 0.0
  %45 = vmatprep.subr.mxu0 0.0
  %46 = vmatpush1.msra.mxu0 0.0
  %47 = vmatprep.subr.mxu0 0.0
  %48 = vmatpush1.msra.mxu0 0.0
  %49 = vmatprep.subr.mxu0 0.0
  %50 = vmatpush1.msra.mxu0 0.0
  %51 = vmatprep.subr.mxu0 0.0
  %52 = vmatpush1.msra.mxu0 0.0
  %53 = vmatprep.subr.mxu0 0.0
  %54 = vmatpush1.msra.mxu0 0.0
  %55 = vmatprep.subr.mxu0 0.0
  %56 = vmatpush1.msra.mxu0 0.0
  %57 = vmatprep.subr.mxu0 0.0
  %58 = vmatpush1.msra.mxu0 0.0
  %59 = vmatprep.subr.mxu0 0.0
  %60 = vmatpush1.msra.mxu0 0.0
  %61 = vmatprep.subr.mxu0 0.0
  %62 = vmatpush1.msra.mxu0 0.0
  %63 = vmatprep.subr.mxu0 0.0
  %64 = vmatpush1.msra.mxu0 0.0
  %65 = vmatprep.subr.mxu0 0.0
  %66 = vmatpush1.msra.mxu0 0.0
  %67 = vmatprep.subr.mxu0 0.0
  %68 = vmatpush1.msra.mxu0 0.0
  %69 = vmatprep.subr.mxu0 0.0
  %70 = vmatpush1.msra.mxu0 0.0
  %71 = vmatprep.subr.mxu0 0.0
  %72 = vmatpush1.msra.mxu0 0.0
  %73 = vmatprep.subr.mxu0 0.0
  %74 = vmatpush1.msra.mxu0 0.0
  %75 = vmatprep.subr.mxu0 0.0
  %76 = vmatpush1.msra.mxu0 0.0
  %77 = vmatprep.subr.mxu0 0.0
  %78 = vmatpush1.msra.mxu0 0.0
  %79 = vmatprep.subr.mxu0 0.0
  %80 = vmatpush1.msra.mxu0 0.0
  %81 = vmatprep.mubr.f32.mxu0 0.0
  %82 = vmatmul.mubr.f32.gmra.mrb[0].mxu0 %v15
  %v83 = vpop.f32.mrb[0].mxu0
  %v84 = vadd.f32 0.0, %v83
  %v85 = vpop.f32.mrb[0].mxu0
  %86 = vdwg.mxu0
  %87 = vst [vmem:[%s2] sm:$0xff] %v84
  // Predicated region
  $region10: #{conv2d_pallas.1} parent=0 // pred_check
    _
  $region11: #{conv2d_pallas.1} parent=0 // pred_check_branch
    %89 = sbr.rel (0) target = $region13
  $region12: #{conv2d_pallas.1} parent=0 // pred_region
    _
  $region13: #{conv2d_pallas.1} parent=0 // pred_fallthru
    _
  // Predicated region
  $region14: #{conv2d_pallas.1} parent=0 // pred_check
    _
  $region15: #{conv2d_pallas.1} parent=0 // pred_check_branch
    %91 = sbr.rel (0) target = $region17
  $region16: #{conv2d_pallas.1} parent=0 // pred_region
    _
  $region17: #{conv2d_pallas.1} parent=0 // pred_fallthru
    _

</llo_original>
